<compile_context>
chip_gen: v7x
topology: tpu7x:2x2x1
jax: 0.10.0
libtpu: 0.0.40
codegen_flags: <defaults>
</compile_context>

<pallas_src>
import functools
import math

import jax
import jax.numpy as jnp
from jax import lax
from jax.experimental import pallas as pl
from jax.experimental.pallas import tpu as pltpu


def _flash_sdpa_kernel(q_ref, k_ref, v_ref, o_ref,
                       q_sc, m_sc, l_sc, acc_sc, *,
                       inv_scale, lk, tk, mask_k, exp_dtype, mm_dtype):
    """One (head-group, q-tile, kv-tile) flash-attention step.

    q_ref: (G, Tq, D)   k_ref: (G, Tk, D)   v_ref: (G, Tk, Dv)
    o_ref: (1, Tq, G*Dv)   lane-dense output slab
    q_sc : (G, Tq, D)      pre-scaled Q (hoisted out of the kv loop)
    m_sc/l_sc: (G, Tq, 1) f32 running max / denominator
    acc_sc   : (G, Tq, Dv) f32 output accumulator
    """
    kv = pl.program_id(2)

    @pl.when(kv == 0)
    def _init():
        q = q_ref[...]
        if mm_dtype is not None:
            q = q.astype(mm_dtype)
        # Q block is constant along the kv axis: scale it once, reuse below.
        q_sc[...] = q * inv_scale
        m_sc[...] = jnp.full_like(m_sc, -jnp.inf)
        l_sc[...] = jnp.zeros_like(l_sc)
        acc_sc[...] = jnp.zeros_like(acc_sc)

    q = q_sc[...]
    k = k_ref[...]
    v = v_ref[...]
    if mm_dtype is not None:
        k = k.astype(mm_dtype)
        v = v.astype(mm_dtype)

    # Contract the D axes directly (no explicit K transpose), f32 accumulation.
    s = jnp.einsum("gqd,gkd->gqk", q, k,
                   preferred_element_type=jnp.float32)      # (G, Tq, Tk) f32

    if mask_k:
        # Mask key columns that only exist because Lk was padded to the tile.
        col = kv * tk + lax.broadcasted_iota(jnp.int32, s.shape, 2)
        s = jnp.where(col < lk, s, -1e30)

    # Online (flash) softmax update over the key axis.
    m_prev = m_sc[...]
    m_new = jnp.maximum(m_prev, jnp.max(s, axis=-1, keepdims=True))
    alpha = jnp.exp(m_prev - m_new)                          # rescale factor
    # exp in bf16 only for bf16 inputs (v6e/v7x bf16 EUP); f32 otherwise.
    p = jnp.exp((s - m_new).astype(exp_dtype))               # (G, Tq, Tk)

    l_sc[...] = alpha * l_sc[...] + jnp.sum(p, axis=-1, keepdims=True,
                                            dtype=jnp.float32)
    acc_sc[...] = alpha * acc_sc[...] + jnp.einsum(
        "gqk,gkd->gqd", p.astype(v.dtype), v,
        preferred_element_type=jnp.float32)
    m_sc[...] = m_new

    @pl.when(kv == pl.num_programs(2) - 1)
    def _finalize():
        # Exact reciprocal: it runs once per output tile, approx buys nothing.
        inv_l = pl.reciprocal(l_sc[...], approx=False)
        out = acc_sc[...] * inv_l                            # (G, Tq, Dv) f32
        g_sz = out.shape[0]
        if g_sz == 1:
            o_ref[...] = out.astype(o_ref.dtype)
        else:
            # Lane-dense store: pack the G heads along the lane axis so the
            # stored last dim is G*Dv instead of Dv (avoids masked vst.msk
            # partial stores for narrow head dims).
            slab = jnp.concatenate([out[g] for g in range(g_sz)], axis=-1)
            o_ref[...] = slab[None].astype(o_ref.dtype)


def _round_up(n, m):
    return -(-n // m) * m


def _pick_tile(n, candidates=(512, 256, 128)):
    """Tile for an axis of length n: the (8-aligned) full extent if small,
    else the largest candidate that keeps padding waste modest."""
    if n <= candidates[0]:
        return _round_up(n, 8)
    for c in candidates:
        if _round_up(n, c) - n <= c // 4:
            return c
    return candidates[-1]


def _pick_group(bh, lq_pad, lk_pad):
    """Heads per grid step: amortise per-step overhead for tiny sequences, but
    keep >= 2 grid points on the parallel axes (v7x has 2 TensorCores)."""
    if lq_pad >= 128 or lq_pad * lk_pad >= 128 * 128:
        return 1
    for g in range(min(bh, 32), 0, -1):
        if bh % g != 0:
            continue
        if g * lq_pad > 256:
            continue
        if bh >= 2 and bh // g < 2:
            continue
        return g
    return 1


def _vmem_bytes(g, tq, tk, d, dv, item, kv_bufs):
    q_blk = 2 * g * tq * d * item                    # double-buffered Q block
    kv_blk = kv_bufs * g * tk * (d + dv) * item      # K and V blocks
    o_blk = 2 * tq * g * dv * item                   # output block
    scratch = g * tq * d * item + 4 * g * tq * (dv + 2)
    inter = 2 * 4 * g * tq * tk                      # f32 s and p intermediates
    return q_blk + kv_blk + o_blk + scratch + inter


_VMEM_BUDGET = 20 * 1024 * 1024      # keep well under v7x's 64 MiB physical VMEM
_VMEM_LIMIT = 32 * 1024 * 1024       # explicit scoped-VMEM limit (safe on all gens)


def scaled_dot_product_attention(query, key, value, mask=None, *,
                                 softmax_exp_dtype=None, matmul_dtype=None):
    """query: [B,H,Lq,D], key: [B,H,Lk,D], value: [B,H,Lk,Dv] -> [B,H,Lq,Dv].

    softmax_exp_dtype: dtype for the exp in the online softmax (None = auto:
        bf16 only when the inputs are bf16, else f32).
    matmul_dtype: optional dtype (e.g. jnp.bfloat16) to cast Q/K/V to for the
        two MXU matmuls while keeping f32 accumulation (flag-gated speedup for
        f32 inputs; default None keeps native-dtype parity).
    """
    if mask is not None:
        # TODO(synk): mask (masked_fill -1e9) not implemented in the kernel.
        raise NotImplementedError("mask is not supported by this kernel")

    B, H, Lq, D = query.shape
    Lk = key.shape[2]
    Dv = value.shape[-1]
    BH = B * H

    # matches torch: scale = sqrt(FloatTensor([query_key_size]))
    inv_scale = 1.0 / math.sqrt(float(D))

    if softmax_exp_dtype is None:
        softmax_exp_dtype = (jnp.bfloat16
                             if jnp.dtype(query.dtype) == jnp.dtype(jnp.bfloat16)
                             else jnp.float32)

    dev_kind = ""
    try:
        dev_kind = jax.devices()[0].device_kind.lower()
    except Exception:
        pass
    is_v5 = "v5" in dev_kind

    qf = query.reshape(BH, Lq, D)
    kf = key.reshape(BH, Lk, D)
    vf = value.reshape(BH, Lk, Dv)

    item = jnp.dtype(query.dtype).itemsize
    kv_bufs_budget = 3 if is_v5 else 2

    # ---- tile / head-group selection, budgeted against VMEM -----------------
    lq8, lk8 = _round_up(Lq, 8), _round_up(Lk, 8)
    G = _pick_group(BH, lq8, lk8)
    Tq = lq8 if G > 1 else _pick_tile(Lq)
    Tk = _pick_tile(Lk)
    while _vmem_bytes(G, Tq, Tk, D, Dv, item, kv_bufs_budget) > _VMEM_BUDGET:
        if Tk >= 256 and Tk % 16 == 0:
            Tk //= 2
        elif Tq >= 256 and Tq % 16 == 0:
            Tq //= 2
        else:
            break

    Lq_pad = _round_up(Lq, Tq)
    Lk_pad = _round_up(Lk, Tk)
    if Lq_pad != Lq:
        qf = jnp.pad(qf, ((0, 0), (0, Lq_pad - Lq), (0, 0)))
    if Lk_pad != Lk:
        kf = jnp.pad(kf, ((0, 0), (0, Lk_pad - Lk), (0, 0)))
        vf = jnp.pad(vf, ((0, 0), (0, Lk_pad - Lk), (0, 0)))

    grid = (BH // G, Lq_pad // Tq, Lk_pad // Tk)

    kernel = functools.partial(
        _flash_sdpa_kernel,
        inv_scale=inv_scale, lk=Lk, tk=Tk, mask_k=(Lk_pad != Lk),
        exp_dtype=softmax_exp_dtype, mm_dtype=matmul_dtype)

    # On v5-class chips, deeper K/V buffering hides the per-kv-step DMA
    # (only worth it when the kv stream is more than a couple of steps long).
    kv_spec_kwargs = ({"pipeline_mode": pl.Buffered(3)}
                      if (is_v5 and grid[2] > 2) else {})

    # K/V are re-streamed once per q tile; reflect that in the cost estimate.
    q_reuse = Lq_pad // Tq
    cost = pl.CostEstimate(
        flops=int(2 * BH * Lq * Lk * (D + Dv)),
        transcendentals=int(BH * Lq * Lk),
        bytes_accessed=int((qf.size + (kf.size + vf.size) * q_reuse
                            + (BH // G) * Lq_pad * G * Dv) * item),
    )

    q_sc_dtype = matmul_dtype if matmul_dtype is not None else query.dtype

    out = pl.pallas_call(
        kernel,
        out_shape=jax.ShapeDtypeStruct((BH // G, Lq_pad, G * Dv), query.dtype),
        grid_spec=pltpu.PrefetchScalarGridSpec(
            num_scalar_prefetch=0,
            grid=grid,
            in_specs=[
                pl.BlockSpec((G, Tq, D), lambda g, i, j: (g, i, 0)),
                pl.BlockSpec((G, Tk, D), lambda g, i, j: (g, j, 0),
                             **kv_spec_kwargs),
                pl.BlockSpec((G, Tk, Dv), lambda g, i, j: (g, j, 0),
                             **kv_spec_kwargs),
            ],
            out_specs=pl.BlockSpec((1, Tq, G * Dv), lambda g, i, j: (g, i, 0)),
            scratch_shapes=[
                pltpu.VMEM((G, Tq, D), q_sc_dtype),     # pre-scaled Q
                pltpu.VMEM((G, Tq, 1), jnp.float32),    # running max
                pltpu.VMEM((G, Tq, 1), jnp.float32),    # running denominator
                pltpu.VMEM((G, Tq, Dv), jnp.float32),   # output accumulator
            ],
        ),
        compiler_params=pltpu.CompilerParams(
            dimension_semantics=("parallel", "parallel", "arbitrary"),
            vmem_limit_bytes=_VMEM_LIMIT),
        cost_estimate=cost,
    )(qf, kf, vf)

    # Undo the lane-dense head packing and the Lq padding.
    out = out.reshape(BH // G, Lq_pad, G, Dv)
    out = jnp.transpose(out, (0, 2, 1, 3)).reshape(BH, Lq_pad, Dv)
    return out[:, :Lq, :].reshape(B, H, Lq, Dv)


def _reference(query, key, value):
    scale = math.sqrt(float(query.shape[-1]))
    s = jnp.einsum("bhqd,bhkd->bhqk", query, key) / scale
    p = jax.nn.softmax(s, axis=3)
    return jnp.einsum("bhqk,bhkd->bhqd", p, value)


if __name__ == "__main__":
    B, H, Lq, Lk, D, Dv = 2, 2, 8, 8, 32, 32   # query_key_size = 32
    key0 = jax.random.PRNGKey(0)
    kq, kk, kv = jax.random.split(key0, 3)
    query = jax.random.normal(kq, (B, H, Lq, D), dtype=jnp.float32)
    key_t = jax.random.normal(kk, (B, H, Lk, D), dtype=jnp.float32)
    value = jax.random.normal(kv, (B, H, Lk, Dv), dtype=jnp.float32)

    out = scaled_dot_product_attention(query, key_t, value)
    jax.block_until_ready(out)

    ref = _reference(query, key_t, value)
    assert out.shape == (B, H, Lq, Dv)
    # f32 path with exact final reciprocal: should match the reference tightly.
    assert jnp.allclose(out, ref, atol=1e-3, rtol=1e-3), "mismatch vs reference"

    print("KERNEL_OK")
</pallas_src>

<mosaic_0001>
module attributes {stable_mosaic.version = 11 : i64} {
  func.func @_flash_sdpa_kernel(%arg0: i32, %arg1: i32, %arg2: i32, %arg3: memref<2x8x32xf32, #tpu.memory_space<vmem>>, %arg4: memref<2x8x32xf32, #tpu.memory_space<vmem>>, %arg5: memref<2x8x32xf32, #tpu.memory_space<vmem>>, %arg6: memref<1x8x64xf32, #tpu.memory_space<vmem>>, %arg7: memref<2x8x32xf32, #tpu.memory_space<vmem>>, %arg8: memref<2x8x1xf32, #tpu.memory_space<vmem>>, %arg9: memref<2x8x1xf32, #tpu.memory_space<vmem>>, %arg10: memref<2x8x32xf32, #tpu.memory_space<vmem>>) attributes {dimension_semantics = [#tpu.dimension_semantics<parallel>, #tpu.dimension_semantics<parallel>, #tpu.dimension_semantics<arbitrary>], iteration_bounds = array<i64: 2, 1, 1>, scalar_prefetch = 0 : i64, scratch_operands = 4 : i64, tpu.core_type = #tpu.core_type<tc>, window_params = [{transform_indices = @transform_0, window_bounds = array<i64: 2, 8, 32>}, {transform_indices = @transform_1, window_bounds = array<i64: 2, 8, 32>}, {transform_indices = @transform_2, window_bounds = array<i64: 2, 8, 32>}, {transform_indices = @transform_3, window_bounds = array<i64: 1, 8, 64>}]} {
    %c0_i32 = arith.constant 0 : i32
    %0 = arith.cmpi eq, %arg2, %c0_i32 : i32
    %1 = arith.extui %0 : i1 to i32
    %c0_i32_0 = arith.constant 0 : i32
    %2 = arith.cmpi ne, %1, %c0_i32_0 : i32
    scf.if %2 {
      %c0_32 = arith.constant 0 : index
      %c0_33 = arith.constant 0 : index
      %c0_34 = arith.constant 0 : index
      %32 = vector.load %arg3[%c0_32, %c0_33, %c0_34] : memref<2x8x32xf32, #tpu.memory_space<vmem>>, vector<2x8x32xf32>
      %cst_35 = arith.constant 0.176776692 : f32
      %33 = vector.broadcast %cst_35 : f32 to vector<2x8x32xf32>
      %34 = arith.mulf %32, %33 : vector<2x8x32xf32>
      %c0_36 = arith.constant 0 : index
      %c0_37 = arith.constant 0 : index
      %c0_38 = arith.constant 0 : index
      %35 = vector.load %arg7[%c0_36, %c0_37, %c0_38] : memref<2x8x32xf32, #tpu.memory_space<vmem>>, vector<2x8x32xf32>
      tpu.vector_store %arg7[%c0_36, %c0_37, %c0_38], %34 {strides = array<i32>} : memref<2x8x32xf32, #tpu.memory_space<vmem>>, vector<2x8x32xf32>,
      %cst_39 = arith.constant 0xFF800000 : f32
      %36 = vector.broadcast %cst_39 : f32 to vector<2x8x1xf32>
      %c0_40 = arith.constant 0 : index
      %c0_41 = arith.constant 0 : index
      %c0_42 = arith.constant 0 : index
      %37 = vector.load %arg8[%c0_40, %c0_41, %c0_42] : memref<2x8x1xf32, #tpu.memory_space<vmem>>, vector<2x8x1xf32>
      tpu.vector_store %arg8[%c0_40, %c0_41, %c0_42], %36 {strides = array<i32>} : memref<2x8x1xf32, #tpu.memory_space<vmem>>, vector<2x8x1xf32>,
      %cst_43 = arith.constant 0.000000e+00 : f32
      %38 = vector.broadcast %cst_43 : f32 to vector<2x8x1xf32>
      %c0_44 = arith.constant 0 : index
      %c0_45 = arith.constant 0 : index
      %c0_46 = arith.constant 0 : index
      %39 = vector.load %arg9[%c0_44, %c0_45, %c0_46] : memref<2x8x1xf32, #tpu.memory_space<vmem>>, vector<2x8x1xf32>
      tpu.vector_store %arg9[%c0_44, %c0_45, %c0_46], %38 {strides = array<i32>} : memref<2x8x1xf32, #tpu.memory_space<vmem>>, vector<2x8x1xf32>,
      %cst_47 = arith.constant 0.000000e+00 : f32
      %40 = vector.broadcast %cst_47 : f32 to vector<2x8x32xf32>
      %c0_48 = arith.constant 0 : index
      %c0_49 = arith.constant 0 : index
      %c0_50 = arith.constant 0 : index
      %41 = vector.load %arg10[%c0_48, %c0_49, %c0_50] : memref<2x8x32xf32, #tpu.memory_space<vmem>>, vector<2x8x32xf32>
      tpu.vector_store %arg10[%c0_48, %c0_49, %c0_50], %40 {strides = array<i32>} : memref<2x8x32xf32, #tpu.memory_space<vmem>>, vector<2x8x32xf32>,
    } else {
    }
    %c0 = arith.constant 0 : index
    %c0_1 = arith.constant 0 : index
    %c0_2 = arith.constant 0 : index
    %3 = vector.load %arg7[%c0, %c0_1, %c0_2] : memref<2x8x32xf32, #tpu.memory_space<vmem>>, vector<2x8x32xf32>
    %c0_3 = arith.constant 0 : index
    %c0_4 = arith.constant 0 : index
    %c0_5 = arith.constant 0 : index
    %4 = vector.load %arg4[%c0_3, %c0_4, %c0_5] : memref<2x8x32xf32, #tpu.memory_space<vmem>>, vector<2x8x32xf32>
    %c0_6 = arith.constant 0 : index
    %c0_7 = arith.constant 0 : index
    %c0_8 = arith.constant 0 : index
    %5 = vector.load %arg5[%c0_6, %c0_7, %c0_8] : memref<2x8x32xf32, #tpu.memory_space<vmem>>, vector<2x8x32xf32>
    "tpu.trace_start"() <{level = 10 : i32, message = "gqd,gkd->gqk"}> : () -> ()
    %cst = arith.constant dense<0.000000e+00> : vector<2x8x8xf32>
    %6 = tpu.matmul %3, %4, %cst {dimension_numbers = #tpu.dot_dimension_numbers<[2], [2], [1], [1], [0, 0, 0, 1, 1, 1], [0], [0]>} : vector<2x8x32xf32>, vector<2x8x32xf32>, vector<2x8x8xf32> -> vector<2x8x8xf32>
    "tpu.trace_stop"() : () -> ()
    %c0_9 = arith.constant 0 : index
    %c0_10 = arith.constant 0 : index
    %c0_11 = arith.constant 0 : index
    %7 = vector.load %arg8[%c0_9, %c0_10, %c0_11] : memref<2x8x1xf32, #tpu.memory_space<vmem>>, vector<2x8x1xf32>
    %cst_12 = arith.constant dense<0xFF800000> : vector<2x8xf32>
    %8 = vector.multi_reduction <maximumf>, %6, %cst_12 [2] : vector<2x8x8xf32> to vector<2x8xf32>
    %9 = vector.shape_cast %8 : vector<2x8xf32> to vector<2x8x1xf32>
    %10 = arith.maximumf %7, %9 : vector<2x8x1xf32>
    %11 = arith.subf %7, %10 : vector<2x8x1xf32>
    %12 = math.exp %11 : vector<2x8x1xf32>
    %13 = vector.broadcast %10 : vector<2x8x1xf32> to vector<2x8x8xf32>
    %14 = arith.subf %6, %13 : vector<2x8x8xf32>
    %15 = math.exp %14 : vector<2x8x8xf32>
    %c0_13 = arith.constant 0 : index
    %c0_14 = arith.constant 0 : index
    %c0_15 = arith.constant 0 : index
    %16 = vector.load %arg9[%c0_13, %c0_14, %c0_15] : memref<2x8x1xf32, #tpu.memory_space<vmem>>, vector<2x8x1xf32>
    %17 = arith.mulf %12, %16 : vector<2x8x1xf32>
    %cst_16 = arith.constant dense<0.000000e+00> : vector<2x8xf32>
    %18 = vector.multi_reduction <add>, %15, %cst_16 [2] : vector<2x8x8xf32> to vector<2x8xf32>
    %19 = vector.shape_cast %18 : vector<2x8xf32> to vector<2x8x1xf32>
    %20 = arith.addf %17, %19 : vector<2x8x1xf32>
    %c0_17 = arith.constant 0 : index
    %c0_18 = arith.constant 0 : index
    %c0_19 = arith.constant 0 : index
    %21 = vector.load %arg9[%c0_17, %c0_18, %c0_19] : memref<2x8x1xf32, #tpu.memory_space<vmem>>, vector<2x8x1xf32>
    tpu.vector_store %arg9[%c0_17, %c0_18, %c0_19], %20 {strides = array<i32>} : memref<2x8x1xf32, #tpu.memory_space<vmem>>, vector<2x8x1xf32>,
    %c0_20 = arith.constant 0 : index
    %c0_21 = arith.constant 0 : index
    %c0_22 = arith.constant 0 : index
    %22 = vector.load %arg10[%c0_20, %c0_21, %c0_22] : memref<2x8x32xf32, #tpu.memory_space<vmem>>, vector<2x8x32xf32>
    %23 = vector.broadcast %12 : vector<2x8x1xf32> to vector<2x8x32xf32>
    %24 = arith.mulf %23, %22 : vector<2x8x32xf32>
    "tpu.trace_start"() <{level = 10 : i32, message = "gqk,gkd->gqd"}> : () -> ()
    %cst_23 = arith.constant dense<0.000000e+00> : vector<2x8x32xf32>
    %25 = tpu.matmul %15, %5, %cst_23 {dimension_numbers = #tpu.dot_dimension_numbers<[2], [1], [1], [2], [0, 0, 0, 1, 1, 2], [0], [0]>} : vector<2x8x8xf32>, vector<2x8x32xf32>, vector<2x8x32xf32> -> vector<2x8x32xf32>
    "tpu.trace_stop"() : () -> ()
    %26 = arith.addf %24, %25 : vector<2x8x32xf32>
    %c0_24 = arith.constant 0 : index
    %c0_25 = arith.constant 0 : index
    %c0_26 = arith.constant 0 : index
    %27 = vector.load %arg10[%c0_24, %c0_25, %c0_26] : memref<2x8x32xf32, #tpu.memory_space<vmem>>, vector<2x8x32xf32>
    tpu.vector_store %arg10[%c0_24, %c0_25, %c0_26], %26 {strides = array<i32>} : memref<2x8x32xf32, #tpu.memory_space<vmem>>, vector<2x8x32xf32>,
    %c0_27 = arith.constant 0 : index
    %c0_28 = arith.constant 0 : index
    %c0_29 = arith.constant 0 : index
    %28 = vector.load %arg8[%c0_27, %c0_28, %c0_29] : memref<2x8x1xf32, #tpu.memory_space<vmem>>, vector<2x8x1xf32>
    tpu.vector_store %arg8[%c0_27, %c0_28, %c0_29], %10 {strides = array<i32>} : memref<2x8x1xf32, #tpu.memory_space<vmem>>, vector<2x8x1xf32>,
    %c0_i32_30 = arith.constant 0 : i32
    %29 = arith.cmpi eq, %arg2, %c0_i32_30 : i32
    %30 = arith.extui %29 : i1 to i32
    %c0_i32_31 = arith.constant 0 : i32
    %31 = arith.cmpi ne, %30, %c0_i32_31 : i32
    scf.if %31 {
      %c0_32 = arith.constant 0 : index
      %c0_33 = arith.constant 0 : index
      %c0_34 = arith.constant 0 : index
      %32 = vector.load %arg9[%c0_32, %c0_33, %c0_34] : memref<2x8x1xf32, #tpu.memory_space<vmem>>, vector<2x8x1xf32>
      %33 = tpu.reciprocal %32 : vector<2x8x1xf32> -> vector<2x8x1xf32>
      %c0_35 = arith.constant 0 : index
      %c0_36 = arith.constant 0 : index
      %c0_37 = arith.constant 0 : index
      %34 = vector.load %arg10[%c0_35, %c0_36, %c0_37] : memref<2x8x32xf32, #tpu.memory_space<vmem>>, vector<2x8x32xf32>
      %35 = vector.broadcast %33 : vector<2x8x1xf32> to vector<2x8x32xf32>
      %36 = arith.mulf %34, %35 : vector<2x8x32xf32>
      %37 = vector.extract_strided_slice %36 {offsets = [0, 0, 0], sizes = [1, 8, 32], strides = [1, 1, 1]} : vector<2x8x32xf32> to vector<1x8x32xf32>
      %38 = vector.shape_cast %37 : vector<1x8x32xf32> to vector<8x32xf32>
      %39 = vector.extract_strided_slice %36 {offsets = [1, 0, 0], sizes = [1, 8, 32], strides = [1, 1, 1]} : vector<2x8x32xf32> to vector<1x8x32xf32>
      %40 = vector.shape_cast %39 : vector<1x8x32xf32> to vector<8x32xf32>
      %41 = tpu.concatenate %38, %40 in 1 : vector<8x32xf32>, vector<8x32xf32> -> vector<8x64xf32>
      %42 = vector.shape_cast %41 : vector<8x64xf32> to vector<1x8x64xf32>
      %c0_38 = arith.constant 0 : index
      %c0_39 = arith.constant 0 : index
      %c0_40 = arith.constant 0 : index
      %43 = vector.load %arg6[%c0_38, %c0_39, %c0_40] : memref<1x8x64xf32, #tpu.memory_space<vmem>>, vector<1x8x64xf32>
      tpu.vector_store %arg6[%c0_38, %c0_39, %c0_40], %42 {strides = array<i32>} : memref<1x8x64xf32, #tpu.memory_space<vmem>>, vector<1x8x64xf32>,
    } else {
    }
    return
  }
  func.func @transform_0(%arg0: i32, %arg1: i32, %arg2: i32) -> (i32, i32, i32) {
    %c0_i32 = arith.constant 0 : i32
    %c0_i32_0 = arith.constant 0 : i32
    return %arg0, %arg1, %c0_i32 : i32, i32, i32
  }
  func.func @transform_1(%arg0: i32, %arg1: i32, %arg2: i32) -> (i32, i32, i32) {
    %c0_i32 = arith.constant 0 : i32
    %c0_i32_0 = arith.constant 0 : i32
    return %arg0, %arg2, %c0_i32 : i32, i32, i32
  }
  func.func @transform_2(%arg0: i32, %arg1: i32, %arg2: i32) -> (i32, i32, i32) {
    %c0_i32 = arith.constant 0 : i32
    %c0_i32_0 = arith.constant 0 : i32
    return %arg0, %arg2, %c0_i32 : i32, i32, i32
  }
  func.func @transform_3(%arg0: i32, %arg1: i32, %arg2: i32) -> (i32, i32, i32) {
    %c0_i32 = arith.constant 0 : i32
    %c0_i32_0 = arith.constant 0 : i32
    return %arg0, %arg1, %c0_i32 : i32, i32, i32
  }
}

</mosaic_0001>

<llo_original>
// kernel: tpu_custom_call.1
$region0: #{tpu_custom_call.1}
  #allocation0 [shape = 'u32[]', space=smem, size = 0x4, offset = 0x4, fixed_abs, tag = 'smem constant byte address 0x4 - core index']
  #allocation1 [shape = 'u32[144,128]{1,0:T(1,128)}', space=vmem, size = 0x12000, scoped, tag = 'internal scratch']
  #allocation2 [shape = 'f32[2,8,32]{2,1,0:T(8,128)}', space=vmem, size = 0x2000, scoped, tag = 'scratch operand']
  #allocation3 [shape = 'f32[2,8,1]{2,1,0:T(8,128)}', space=vmem, size = 0x2000, scoped, tag = 'scratch operand']
  #allocation4 [shape = 'f32[2,8,1]{2,1,0:T(8,128)}', space=vmem, size = 0x2000, scoped, tag = 'scratch operand']
  #allocation5 [shape = 'f32[2,8,32]{2,1,0:T(8,128)}', space=vmem, size = 0x2000, scoped, tag = 'scratch operand']
  %s0 = inlined_call_operand.hbm [shape: f32[4,8,32], index: 0, kind: input, shape index: {}]
  %s1 = inlined_call_operand.hbm [shape: f32[4,8,32], index: 1, kind: input, shape index: {}]
  %s2 = inlined_call_operand.hbm [shape: f32[4,8,32], index: 2, kind: input, shape index: {}]
  %s3 = inlined_call_operand.hbm [shape: f32[2,8,64], index: 3, kind: output, shape index: {}]
  %s4 = sld [smem:[#allocation0]]
  $region65: #{tpu_custom_call.1} parent=0
    _
  %s6 = ssub.s32 1, %s4
  %s7 = scalar_select 0, %s6, %s4
  $region1: #{tpu_custom_call.1} parent=0
    #allocation6 [shape = 'u8[16384]{0}', space=vmem, size = 0x4000, scoped, tag = 'input window, operand 0']
    #allocation7 [shape = 's32[2]{0}', space=sflag, size = 0x8, scoped, tag = 'scoped memory for tpu_custom_call.1']
    #allocation8 [shape = 's32[2]{0}', space=sflag, size = 0x8, scoped, tag = 'scoped memory for tpu_custom_call.1']
    #allocation9 [shape = 'u8[16384]{0}', space=vmem, size = 0x4000, scoped, tag = 'input window, operand 1']
    #allocation10 [shape = 's32[2]{0}', space=sflag, size = 0x8, scoped, tag = 'scoped memory for tpu_custom_call.1']
    #allocation11 [shape = 'u8[16384]{0}', space=vmem, size = 0x4000, scoped, tag = 'input window, operand 2']
    #allocation12 [shape = 'u8[8192]{0}', space=vmem, size = 0x2000, scoped, tag = 'output window, operand 0']
    %8 = vsyncpa [#allocation7], 0
    %s9 = scalar_lea.sflag [#allocation7], 1
    %10 = vsyncpa %s9, 0
    %11 = vsyncpa [#allocation10], 0
    %s12 = scalar_lea.sflag [#allocation10], 1
    %13 = vsyncpa %s12, 0
    %14 = vsyncpa [#allocation8], 0
    %s15 = scalar_lea.sflag [#allocation8], 1
    %16 = vsyncpa %s15, 0
    loop: start=0, step=1, limit=4
    $region2: #{tpu_custom_call.1} parent=1 // loop_pre_header
      _
    $region3: #{tpu_custom_call.1} parent=1 // loop_header
      %s18 = sphi 0, %s22
      %p19 = scmp.ge.s32.totalorder %s18, 4
      %s25 = sphi 0, %s44
      %s26 = sphi 0, %s40
      %s27 = sphi 0, %s36
      %s28 = sphi 0, %s25
      %s29 = sphi 0, %s26
      %s30 = sphi 0, %s27
      %s31 = sphi 0, %s28
      %s32 = sphi 0, %s29
      %s33 = sphi 0, %s30
      %s49 = sphi 0, %s51
      %s52 = sphi 0, %s49
      %s53 = sphi 0, %s52
      %s69 = sphi 0, %s53
      %s77 = sphi 0, %s79
      %s80 = sphi 0, %s77
      %s81 = sphi 0, %s80
      %s97 = sphi 0, %s81
      %s105 = sphi 0, %s107
      %s108 = sphi 0, %s105
      %s109 = sphi 0, %s108
      %s125 = sphi 0, %s109
      %s133 = sphi 0, %s135
      %s136 = sphi 0, %s133
      %s137 = sphi 0, %s136
      %s153 = sphi 0, %s137
    $region4: #{tpu_custom_call.1} parent=1 // loop_header_branch
      %21 = sbr.rel (%p19) target = $region8
    $region5: #{tpu_custom_call.1} parent=1 // loop_body
      %s23 = ssub.s32 %s18, 1
      %s24 = ssub.s32 %s18, 2
      %s34 = sadd.s32 1, %s27
      %p35 = scmp.ge.s32.totalorder %s34, 1
      %s36 = scalar_select %p35, 0, %s34
      %s37 = sadd.s32 1, %s26
      %s38 = scalar_select %p35, %s37, %s26
      %p39 = scmp.ge.s32.totalorder %s38, 1
      %s40 = scalar_select %p39, 0, %s38
      %s41 = sadd.s32 1, %s25
      %s42 = scalar_select %p39, %s41, %s25
      %p43 = scmp.ge.s32.totalorder %s42, 2
      %s44 = scalar_select %p43, 0, %s42
      %s45 = ssub.s32 %s25, %s44
      %s46 = ssub.s32 %s26, %s40
      %s47 = sor.u32 %s45, %s46
      %p48 = scmp.eq.s32.totalorder %s47, 0
      %s50 = sadd.s32 %s49, 1
      %s51 = scalar_select %p48, %s49, %s50
      %p54 = pneg %p48
      %p55 = scmp.eq.s32.totalorder %s18, 1
      %p56 = por %p54, %p55
      %p57 = scmp.ne.s32.totalorder %s49, %s52
      %p58 = scmp.eq.s32.totalorder %s18, 0
      %p59 = por %p57, %p58
      %p60 = scmp.ne.s32.totalorder %s49, %s52
      %p61 = scmp.eq.s32.totalorder %s23, 1
      %p62 = por %p60, %p61
      %p63 = scmp.ne.s32.totalorder %s52, %s53
      %p64 = scmp.eq.s32.totalorder %s23, 0
      %p65 = por %p63, %p64
      %p66 = scmp.ne.s32.totalorder %s52, %s53
      %p67 = scmp.eq.s32.totalorder %s24, 1
      %p68 = por %p66, %p67
      %p70 = scmp.ne.s32.totalorder %s53, %s69
      %p71 = scmp.eq.s32.totalorder %s24, 0
      %p72 = por %p70, %p71
      %s73 = ssub.s32 %s25, %s44
      %s74 = ssub.s32 %s27, %s36
      %s75 = sor.u32 %s73, %s74
      %p76 = scmp.eq.s32.totalorder %s75, 0
      %s78 = sadd.s32 %s77, 1
      %s79 = scalar_select %p76, %s77, %s78
      %p82 = pneg %p76
      %p83 = scmp.eq.s32.totalorder %s18, 1
      %p84 = por %p82, %p83
      %p85 = scmp.ne.s32.totalorder %s77, %s80
      %p86 = scmp.eq.s32.totalorder %s18, 0
      %p87 = por %p85, %p86
      %p88 = scmp.ne.s32.totalorder %s77, %s80
      %p89 = scmp.eq.s32.totalorder %s23, 1
      %p90 = por %p88, %p89
      %p91 = scmp.ne.s32.totalorder %s80, %s81
      %p92 = scmp.eq.s32.totalorder %s23, 0
      %p93 = por %p91, %p92
      %p94 = scmp.ne.s32.totalorder %s80, %s81
      %p95 = scmp.eq.s32.totalorder %s24, 1
      %p96 = por %p94, %p95
      %p98 = scmp.ne.s32.totalorder %s81, %s97
      %p99 = scmp.eq.s32.totalorder %s24, 0
      %p100 = por %p98, %p99
      %s101 = ssub.s32 %s25, %s44
      %s102 = ssub.s32 %s27, %s36
      %s103 = sor.u32 %s101, %s102
      %p104 = scmp.eq.s32.totalorder %s103, 0
      %s106 = sadd.s32 %s105, 1
      %s107 = scalar_select %p104, %s105, %s106
      %p110 = pneg %p104
      %p111 = scmp.eq.s32.totalorder %s18, 1
      %p112 = por %p110, %p111
      %p113 = scmp.ne.s32.totalorder %s105, %s108
      %p114 = scmp.eq.s32.totalorder %s18, 0
      %p115 = por %p113, %p114
      %p116 = scmp.ne.s32.totalorder %s105, %s108
      %p117 = scmp.eq.s32.totalorder %s23, 1
      %p118 = por %p116, %p117
      %p119 = scmp.ne.s32.totalorder %s108, %s109
      %p120 = scmp.eq.s32.totalorder %s23, 0
      %p121 = por %p119, %p120
      %p122 = scmp.ne.s32.totalorder %s108, %s109
      %p123 = scmp.eq.s32.totalorder %s24, 1
      %p124 = por %p122, %p123
      %p126 = scmp.ne.s32.totalorder %s109, %s125
      %p127 = scmp.eq.s32.totalorder %s24, 0
      %p128 = por %p126, %p127
      %s129 = ssub.s32 %s25, %s44
      %s130 = ssub.s32 %s26, %s40
      %s131 = sor.u32 %s129, %s130
      %p132 = scmp.eq.s32.totalorder %s131, 0
      %s134 = sadd.s32 %s133, 1
      %s135 = scalar_select %p132, %s133, %s134
      %p138 = pneg %p132
      %p139 = scmp.eq.s32.totalorder %s18, 1
      %p140 = por %p138, %p139
      %p141 = scmp.ne.s32.totalorder %s133, %s136
      %p142 = scmp.eq.s32.totalorder %s18, 0
      %p143 = por %p141, %p142
      %p144 = scmp.ne.s32.totalorder %s133, %s136
      %p145 = scmp.eq.s32.totalorder %s23, 1
      %p146 = por %p144, %p145
      %p147 = scmp.ne.s32.totalorder %s136, %s137
      %p148 = scmp.eq.s32.totalorder %s23, 0
      %p149 = por %p147, %p148
      %p150 = scmp.ne.s32.totalorder %s136, %s137
      %p151 = scmp.eq.s32.totalorder %s24, 1
      %p152 = por %p150, %p151
      %p154 = scmp.ne.s32.totalorder %s137, %s153
      %p155 = scmp.eq.s32.totalorder %s24, 0
      %p156 = por %p154, %p155
      %p157 = scmp.le.s32.totalorder 1, %s18
      %p158 = scmp.lt.s32.totalorder %s18, 3
      %p159 = pnand %p157, %p158
      %p160 = pneg %p159
      // Predicated region
      $region9: #{tpu_custom_call.1} parent=5 // pred_check
        _
      $region10: #{tpu_custom_call.1} parent=5 // pred_check_branch
        %162 = sbr.rel (%p159) target = $region12
      $region11: #{tpu_custom_call.1} parent=5 // pred_region
        %s163 = ssub.s32 %s18, 1
      $region12: #{tpu_custom_call.1} parent=5 // pred_fallthru
        _
      %p164 = scmp.lt.s32.totalorder %s18, 2
      // Predicated region
      $region13: #{tpu_custom_call.1} parent=5 // pred_check
        %p165 = pneg %p164
      $region14: #{tpu_custom_call.1} parent=5 // pred_check_branch
        %167 = sbr.rel (%p165) target = $region16
      $region15: #{tpu_custom_call.1} parent=5 // pred_region
        // Predicated region
        $region17: #{tpu_custom_call.1} parent=15 // pred_check
          %p168 = pneg %p59
        $region18: #{tpu_custom_call.1} parent=15 // pred_check_branch
          %170 = sbr.rel (%p168) target = $region20
        $region19: #{tpu_custom_call.1} parent=15 // pred_region
          %s171 = sand.u32 %s49, 1
          %s172 = scalar_lea.sflag [#allocation7], %s171
          %s173 = sand.u32 %s49, 1
          %s174 = smul.addr %s173, 16
          %s175 = scalar_lea.vmem [#allocation6], %s174
          %s176 = smul.u32 2, %s25
          %s178 = ssub.s32 256, 256
          %179 = vsyncadd %s172, %s178
          %s180 = sadd.s32 %s26, %s176
          %s181 = smul.addr %s180, 128
          %s182 = scalar_lea.hbm %s0, %s181
          %s183 = sshll.u32 %s175, 4
          %s184 = int_to_ptr.vmem [resolvable:$true] %s183
          %189 = dma.hbm_to_vmem [thread:$0]  %s182, 256, %s184, %s172, 128, 128, 8
        $region20: #{tpu_custom_call.1} parent=15 // pred_fallthru
          _
        // Predicated region
        $region21: #{tpu_custom_call.1} parent=15 // pred_check
          %p190 = pneg %p87
        $region22: #{tpu_custom_call.1} parent=15 // pred_check_branch
          %192 = sbr.rel (%p190) target = $region24
        $region23: #{tpu_custom_call.1} parent=15 // pred_region
          %s193 = sand.u32 %s18, 1
          %s194 = scalar_lea.sflag [#allocation10], %s193
          %s195 = sand.u32 %s77, 1
          %s196 = smul.addr %s195, 16
          %s197 = scalar_lea.vmem [#allocation9], %s196
          %s198 = smul.u32 2, %s25
          %s200 = ssub.s32 256, 256
          %201 = vsyncadd %s194, %s200
          %s202 = sadd.s32 %s27, %s198
          %s203 = smul.addr %s202, 128
          %s204 = scalar_lea.hbm %s1, %s203
          %s205 = sshll.u32 %s197, 4
          %s206 = int_to_ptr.vmem [resolvable:$true] %s205
          %211 = dma.hbm_to_vmem [thread:$0]  %s204, 256, %s206, %s194, 128, 128, 8
        $region24: #{tpu_custom_call.1} parent=15 // pred_fallthru
          _
        // Predicated region
        $region25: #{tpu_custom_call.1} parent=15 // pred_check
          %p212 = pneg %p115
        $region26: #{tpu_custom_call.1} parent=15 // pred_check_branch
          %214 = sbr.rel (%p212) target = $region28
        $region27: #{tpu_custom_call.1} parent=15 // pred_region
          %s215 = sand.u32 %s18, 1
          %s216 = scalar_lea.sflag [#allocation10], %s215
          %s217 = sand.u32 %s105, 1
          %s218 = smul.addr %s217, 16
          %s219 = scalar_lea.vmem [#allocation11], %s218
          %s220 = smul.u32 2, %s25
          %s222 = ssub.s32 256, 256
          %223 = vsyncadd %s216, %s222
          %s224 = sadd.s32 %s27, %s220
          %s225 = smul.addr %s224, 128
          %s226 = scalar_lea.hbm %s2, %s225
          %s227 = sshll.u32 %s219, 4
          %s228 = int_to_ptr.vmem [resolvable:$true] %s227
          %233 = dma.hbm_to_vmem [thread:$0]  %s226, 256, %s228, %s216, 128, 128, 8
        $region28: #{tpu_custom_call.1} parent=15 // pred_fallthru
          _
      $region16: #{tpu_custom_call.1} parent=5 // pred_fallthru
        _
      %p234 = scmp.le.s32.totalorder 1, %s18
      %p235 = scmp.lt.s32.totalorder %s18, 3
      %p236 = pnand %p234, %p235
      %p237 = pneg %p236
      // Predicated region
      $region29: #{tpu_custom_call.1} parent=5 // pred_check
        _
      $region30: #{tpu_custom_call.1} parent=5 // pred_check_branch
        %239 = sbr.rel (%p236) target = $region32
      $region31: #{tpu_custom_call.1} parent=5 // pred_region
        %s240 = ssub.s32 %s18, 1
        %s241 = sand.u32 %s52, 1
        %s242 = scalar_lea.sflag [#allocation7], %s241
        %s243 = sand.u32 %s52, 1
        %s244 = smul.addr %s243, 16
        %s245 = scalar_lea.vmem [#allocation6], %s244
        // Predicated region
        $region33: #{tpu_custom_call.1} parent=31 // pred_check
          %p246 = pneg %p65
        $region34: #{tpu_custom_call.1} parent=31 // pred_check_branch
          %248 = sbr.rel (%p246) target = $region36
        $region35: #{tpu_custom_call.1} parent=31 // pred_region
          %249 = dma.done %s242, 256
        $region36: #{tpu_custom_call.1} parent=31 // pred_fallthru
          _
        %s250 = sand.u32 %s23, 1
        %s251 = scalar_lea.sflag [#allocation10], %s250
        %s252 = sand.u32 %s80, 1
        %s253 = smul.addr %s252, 16
        %s254 = scalar_lea.vmem [#allocation9], %s253
        // Predicated region
        $region37: #{tpu_custom_call.1} parent=31 // pred_check
          %p255 = pneg %p93
        $region38: #{tpu_custom_call.1} parent=31 // pred_check_branch
          %257 = sbr.rel (%p255) target = $region40
        $region39: #{tpu_custom_call.1} parent=31 // pred_region
          %258 = dma.done %s251, 256
        $region40: #{tpu_custom_call.1} parent=31 // pred_fallthru
          _
        %s259 = sand.u32 %s23, 1
        %s260 = scalar_lea.sflag [#allocation10], %s259
        %s261 = sand.u32 %s108, 1
        %s262 = smul.addr %s261, 16
        %s263 = scalar_lea.vmem [#allocation11], %s262
        // Predicated region
        $region41: #{tpu_custom_call.1} parent=31 // pred_check
          %p264 = pneg %p121
        $region42: #{tpu_custom_call.1} parent=31 // pred_check_branch
          %266 = sbr.rel (%p264) target = $region44
        $region43: #{tpu_custom_call.1} parent=31 // pred_region
          %267 = dma.done %s260, 256
        $region44: #{tpu_custom_call.1} parent=31 // pred_fallthru
          _
        %s268 = sand.u32 %s52, 1
        %s269 = scalar_lea.sflag [#allocation7], %s268
        %s270 = sand.u32 %s52, 1
        %s271 = smul.addr %s270, 16
        %s272 = scalar_lea.vmem [#allocation6], %s271
        %p273 = pneg %p65
        %p274 = pneg %p62
        %s275 = sand.u32 %s23, 1
        %s276 = scalar_lea.sflag [#allocation10], %s275
        %s277 = sand.u32 %s80, 1
        %s278 = smul.addr %s277, 16
        %s279 = scalar_lea.vmem [#allocation9], %s278
        %p280 = pneg %p93
        %p281 = pneg %p90
        %s282 = sand.u32 %s23, 1
        %s283 = scalar_lea.sflag [#allocation10], %s282
        %s284 = sand.u32 %s108, 1
        %s285 = smul.addr %s284, 16
        %s286 = scalar_lea.vmem [#allocation11], %s285
        %p287 = pneg %p121
        %p288 = pneg %p118
        %p289 = pneg %p149
        %p290 = pneg %p146
        %s291 = sand.u32 %s136, 1
        %s292 = scalar_lea.sflag [#allocation8], %s291
        %s293 = sand.u32 %s136, 1
        %s294 = smul.addr %s293, 8
        %s295 = scalar_lea.vmem [#allocation12], %s294
        %s296 = smul.u32 2, %s28
        %s297 = smul.u32 2, %s28
        %s298 = smul.u32 2, %s28
        %p299 = scmp.eq.s32.totalorder %s30, 0
        // Predicated region
        $region45: #{tpu_custom_call.1} parent=31 // pred_check
          %p300 = pneg %p299
        $region46: #{tpu_custom_call.1} parent=31 // pred_check_branch
          %302 = sbr.rel (%p300) target = $region48
        $region47: #{tpu_custom_call.1} parent=31 // pred_region
          %v303 = vld [vmem:[%s245] sm:$0xff]
          %v304 = vld [vmem:[%s245 + $0x8] sm:$0xff]
          %v305 = vmul.f32 %v303, 0.17677669
          %v306 = vmul.f32 %v304, 0.17677669
          %vm307 = vcmask 261120
          %308 = vst.msk [vmem:[#allocation2] sm:$0xff] %vm307, %v305
          %309 = vst.msk [vmem:[#allocation2 + $0x8] sm:$0xff] %vm307, %v306
          %vm310 = vcmask 7168
          %311 = vst.msk [vmem:[#allocation3] sm:$0xff] %vm310, -inf
          %312 = vst.msk [vmem:[#allocation3 + $0x8] sm:$0xff] %vm310, -inf
          %313 = vst.msk [vmem:[#allocation4] sm:$0xff] %vm310, 0.0
          %314 = vst.msk [vmem:[#allocation4 + $0x8] sm:$0xff] %vm310, 0.0
          %315 = vst.msk [vmem:[#allocation5] sm:$0xff] %vm307, 0.0
          %316 = vst.msk [vmem:[#allocation5 + $0x8] sm:$0xff] %vm307, 0.0
        $region48: #{tpu_custom_call.1} parent=31 // pred_fallthru
          _
        %v317 = vld [vmem:[#allocation2] sm:$0xff]
        %v318 = vld [vmem:[#allocation2 + $0x8] sm:$0xff]
        %v319 = vld [vmem:[%s254] sm:$0xff]
        %v320 = vld [vmem:[%s254 + $0x8] sm:$0xff]
        %v321 = vld [vmem:[%s263] sm:$0xff]
        %v322 = vld [vmem:[%s263 + $0x8] sm:$0xff]
        %vm323 = vcmask 261120
        %v325 = vsel %vm323, %v317, 0
        %v328 = vsel %vm323, %v319, 0
        %330 = vmatprep.subr.mxu0 0.0
        %331 = vmatpush1.xpose.msra.mxu0 %v328
        %332 = vmatprep.subr.mxu0 0.0
        %333 = vmatpush1.xpose.msra.mxu0 0.0
        %334 = vmatprep.subr.mxu0 0.0
        %335 = vmatpush1.xpose.msra.mxu0 0.0
        %336 = vmatprep.subr.mxu0 0.0
        %337 = vmatpush1.xpose.msra.mxu0 0.0
        %338 = vmatprep.subr.mxu0 0.0
        %339 = vmatpush1.xpose.msra.mxu0 0.0
        %340 = vmatprep.subr.mxu0 0.0
        %341 = vmatpush1.xpose.msra.mxu0 0.0
        %342 = vmatprep.subr.mxu0 0.0
        %343 = vmatpush1.xpose.msra.mxu0 0.0
        %344 = vmatprep.subr.mxu0 0.0
        %345 = vmatpush1.xpose.msra.mxu0 0.0
        %346 = vmatprep.subr.mxu0 0.0
        %347 = vmatpush1.xpose.msra.mxu0 0.0
        %348 = vmatprep.subr.mxu0 0.0
        %349 = vmatpush1.xpose.msra.mxu0 0.0
        %350 = vmatprep.subr.mxu0 0.0
        %351 = vmatpush1.xpose.msra.mxu0 0.0
        %352 = vmatprep.subr.mxu0 0.0
        %353 = vmatpush1.xpose.msra.mxu0 0.0
        %354 = vmatprep.subr.mxu0 0.0
        %355 = vmatpush1.xpose.msra.mxu0 0.0
        %356 = vmatprep.subr.mxu0 0.0
        %357 = vmatpush1.xpose.msra.mxu0 0.0
        %358 = vmatprep.subr.mxu0 0.0
        %359 = vmatpush1.xpose.msra.mxu0 0.0
        %360 = vmatprep.subr.mxu0 0.0
        %361 = vmatpush1.xpose.msra.mxu0 0.0
        %362 = vmatprep.subr.mxu0 0.0
        %363 = vmatpush1.xpose.msra.mxu0 0.0
        %364 = vmatprep.subr.mxu0 0.0
        %365 = vmatpush1.xpose.msra.mxu0 0.0
        %366 = vmatprep.subr.mxu0 0.0
        %367 = vmatpush1.xpose.msra.mxu0 0.0
        %368 = vmatprep.subr.mxu0 0.0
        %369 = vmatpush1.xpose.msra.mxu0 0.0
        %370 = vmatprep.subr.mxu0 0.0
        %371 = vmatpush1.xpose.msra.mxu0 0.0
        %372 = vmatprep.subr.mxu0 0.0
        %373 = vmatpush1.xpose.msra.mxu0 0.0
        %374 = vmatprep.subr.mxu0 0.0
        %375 = vmatpush1.xpose.msra.mxu0 0.0
        %376 = vmatprep.subr.mxu0 0.0
        %377 = vmatpush1.xpose.msra.mxu0 0.0
        %378 = vmatprep.subr.mxu0 0.0
        %379 = vmatpush1.xpose.msra.mxu0 0.0
        %380 = vmatprep.subr.mxu0 0.0
        %381 = vmatpush1.xpose.msra.mxu0 0.0
        %382 = vmatprep.subr.mxu0 0.0
        %383 = vmatpush1.xpose.msra.mxu0 0.0
        %384 = vmatprep.subr.mxu0 0.0
        %385 = vmatpush1.xpose.msra.mxu0 0.0
        %386 = vmatprep.subr.mxu0 0.0
        %387 = vmatpush1.xpose.msra.mxu0 0.0
        %388 = vmatprep.subr.mxu0 0.0
        %389 = vmatpush1.xpose.msra.mxu0 0.0
        %390 = vmatprep.subr.mxu0 0.0
        %391 = vmatpush1.xpose.msra.mxu0 0.0
        %392 = vmatprep.subr.mxu0 0.0
        %393 = vmatpush1.xpose.msra.mxu0 0.0
        %394 = vmatprep.mubr.f32.mxu0 0.0
        %395 = vmatmul.mubr.f32.gmra.mrb[0].mxu0 %v325
        %v396 = vpop.f32.mrb[0].mxu0
        %v397 = vadd.f32 0.0, %v396
        %v398 = vpop.f32.mrb[0].mxu0
        %399 = vdwg.mxu0
        %v401 = vsel %vm323, %v318, 0
        %v404 = vsel %vm323, %v320, 0
        %406 = vmatprep.subr.mxu0 0.0
        %407 = vmatpush1.xpose.msra.mxu0 %v404
        %408 = vmatprep.subr.mxu0 0.0
        %409 = vmatpush1.xpose.msra.mxu0 0.0
        %410 = vmatprep.subr.mxu0 0.0
        %411 = vmatpush1.xpose.msra.mxu0 0.0
        %412 = vmatprep.subr.mxu0 0.0
        %413 = vmatpush1.xpose.msra.mxu0 0.0
        %414 = vmatprep.subr.mxu0 0.0
        %415 = vmatpush1.xpose.msra.mxu0 0.0
        %416 = vmatprep.subr.mxu0 0.0
        %417 = vmatpush1.xpose.msra.mxu0 0.0
        %418 = vmatprep.subr.mxu0 0.0
        %419 = vmatpush1.xpose.msra.mxu0 0.0
        %420 = vmatprep.subr.mxu0 0.0
        %421 = vmatpush1.xpose.msra.mxu0 0.0
        %422 = vmatprep.subr.mxu0 0.0
        %423 = vmatpush1.xpose.msra.mxu0 0.0
        %424 = vmatprep.subr.mxu0 0.0
        %425 = vmatpush1.xpose.msra.mxu0 0.0
        %426 = vmatprep.subr.mxu0 0.0
        %427 = vmatpush1.xpose.msra.mxu0 0.0
        %428 = vmatprep.subr.mxu0 0.0
        %429 = vmatpush1.xpose.msra.mxu0 0.0
        %430 = vmatprep.subr.mxu0 0.0
        %431 = vmatpush1.xpose.msra.mxu0 0.0
        %432 = vmatprep.subr.mxu0 0.0
        %433 = vmatpush1.xpose.msra.mxu0 0.0
        %434 = vmatprep.subr.mxu0 0.0
        %435 = vmatpush1.xpose.msra.mxu0 0.0
        %436 = vmatprep.subr.mxu0 0.0
        %437 = vmatpush1.xpose.msra.mxu0 0.0
        %438 = vmatprep.subr.mxu0 0.0
        %439 = vmatpush1.xpose.msra.mxu0 0.0
        %440 = vmatprep.subr.mxu0 0.0
        %441 = vmatpush1.xpose.msra.mxu0 0.0
        %442 = vmatprep.subr.mxu0 0.0
        %443 = vmatpush1.xpose.msra.mxu0 0.0
        %444 = vmatprep.subr.mxu0 0.0
        %445 = vmatpush1.xpose.msra.mxu0 0.0
        %446 = vmatprep.subr.mxu0 0.0
        %447 = vmatpush1.xpose.msra.mxu0 0.0
        %448 = vmatprep.subr.mxu0 0.0
        %449 = vmatpush1.xpose.msra.mxu0 0.0
        %450 = vmatprep.subr.mxu0 0.0
        %451 = vmatpush1.xpose.msra.mxu0 0.0
        %452 = vmatprep.subr.mxu0 0.0
        %453 = vmatpush1.xpose.msra.mxu0 0.0
        %454 = vmatprep.subr.mxu0 0.0
        %455 = vmatpush1.xpose.msra.mxu0 0.0
        %456 = vmatprep.subr.mxu0 0.0
        %457 = vmatpush1.xpose.msra.mxu0 0.0
        %458 = vmatprep.subr.mxu0 0.0
        %459 = vmatpush1.xpose.msra.mxu0 0.0
        %460 = vmatprep.subr.mxu0 0.0
        %461 = vmatpush1.xpose.msra.mxu0 0.0
        %462 = vmatprep.subr.mxu0 0.0
        %463 = vmatpush1.xpose.msra.mxu0 0.0
        %464 = vmatprep.subr.mxu0 0.0
        %465 = vmatpush1.xpose.msra.mxu0 0.0
        %466 = vmatprep.subr.mxu0 0.0
        %467 = vmatpush1.xpose.msra.mxu0 0.0
        %468 = vmatprep.subr.mxu0 0.0
        %469 = vmatpush1.xpose.msra.mxu0 0.0
        %470 = vmatprep.mubr.f32.mxu0 0.0
        %471 = vmatmul.mubr.f32.gmra.mrb[0].mxu0 %v401
        %v472 = vpop.f32.mrb[0].mxu0
        %v473 = vadd.f32 0.0, %v472
        %v474 = vpop.f32.mrb[0].mxu0
        %475 = vdwg.mxu0
        %v476 = vld [vmem:[#allocation3] sm:$0xff]
        %v477 = vld [vmem:[#allocation3 + $0x8] sm:$0xff]
        %vm478 = vcmask 64512
        %v479 = vsel %vm478, %v397, -inf
        %480 = vmax.xlane.f32.xlu0 %v479
        %v481 = vpop.xlane.xlu0 %480
        %v482 = vsel %vm478, %v473, -inf
        %483 = vmax.xlane.f32.xlu0 %v482
        %v484 = vpop.xlane.xlu0 %483
        %v485 = vmax.f32 %v476, %v481
        %v486 = vmax.f32 %v477, %v484
        %v487 = vsub.f32 %v476, %v485
        %v488 = vsub.f32 %v477, %v486
        %v489 = vmul.f32 %v487, 1.442695
        %v490 = vpow.pop %v489
        %v491 = vmul.f32 %v488, 1.442695
        %v492 = vpow.pop %v491
        %494 = vset.pattern.permute.xlu0 0
        %495 = vperm.xlu0 %494, %v485
        %v496 = vpop.permute.xlu0 %495
        %499 = vset.pattern.permute.xlu0 0
        %500 = vperm.xlu0 %499, %v486
        %v501 = vpop.permute.xlu0 %500
        %v503 = vsub.f32 %v397, %v496
        %v504 = vsub.f32 %v473, %v501
        %v505 = vmul.f32 %v503, 1.442695
        %v506 = vpow.pop %v505
        %v507 = vmul.f32 %v504, 1.442695
        %v508 = vpow.pop %v507
        %v509 = vld [vmem:[#allocation4] sm:$0xff]
        %v510 = vld [vmem:[#allocation4 + $0x8] sm:$0xff]
        %v511 = vmul.f32 %v490, %v509
        %v512 = vmul.f32 %v492, %v510
        %v513 = vsel %vm478, %v506, 0.0
        %514 = vadd.xlane.f32.xlu0 %v513
        %v515 = vpop.xlane.xlu0 %514
        %v516 = vsel %vm478, %v508, 0.0
        %517 = vadd.xlane.f32.xlu0 %v516
        %v518 = vpop.xlane.xlu0 %517
        %v519 = vadd.f32 %v511, %v515
        %v520 = vadd.f32 %v512, %v518
        %vm521 = vcmask 7168
        %522 = vst.msk [vmem:[#allocation4] sm:$0xff] %vm521, %v519
        %523 = vst.msk [vmem:[#allocation4 + $0x8] sm:$0xff] %vm521, %v520
        %v524 = vld [vmem:[#allocation5] sm:$0xff]
        %v525 = vld [vmem:[#allocation5 + $0x8] sm:$0xff]
        %527 = vset.pattern.permute.xlu0 0
        %528 = vperm.xlu0 %527, %v490
        %v529 = vpop.permute.xlu0 %528
        %532 = vset.pattern.permute.xlu0 0
        %533 = vperm.xlu0 %532, %v492
        %v534 = vpop.permute.xlu0 %533
        %v536 = vmul.f32 %v529, %v524
        %v537 = vmul.f32 %v534, %v525
        %v539 = vsel %vm478, %v506, 0
        %541 = vmatprep.subr.mxu0 0.0
        %542 = vmatpush1.msra.mxu0 %v321
        %543 = vmatprep.subr.mxu0 0.0
        %544 = vmatpush1.msra.mxu0 0.0
        %545 = vmatprep.subr.mxu0 0.0
        %546 = vmatpush1.msra.mxu0 0.0
        %547 = vmatprep.subr.mxu0 0.0
        %548 = vmatpush1.msra.mxu0 0.0
        %549 = vmatprep.subr.mxu0 0.0
        %550 = vmatpush1.msra.mxu0 0.0
        %551 = vmatprep.subr.mxu0 0.0
        %552 = vmatpush1.msra.mxu0 0.0
        %553 = vmatprep.subr.mxu0 0.0
        %554 = vmatpush1.msra.mxu0 0.0
        %555 = vmatprep.subr.mxu0 0.0
        %556 = vmatpush1.msra.mxu0 0.0
        %557 = vmatprep.subr.mxu0 0.0
        %558 = vmatpush1.msra.mxu0 0.0
        %559 = vmatprep.subr.mxu0 0.0
        %560 = vmatpush1.msra.mxu0 0.0
        %561 = vmatprep.subr.mxu0 0.0
        %562 = vmatpush1.msra.mxu0 0.0
        %563 = vmatprep.subr.mxu0 0.0
        %564 = vmatpush1.msra.mxu0 0.0
        %565 = vmatprep.subr.mxu0 0.0
        %566 = vmatpush1.msra.mxu0 0.0
        %567 = vmatprep.subr.mxu0 0.0
        %568 = vmatpush1.msra.mxu0 0.0
        %569 = vmatprep.subr.mxu0 0.0
        %570 = vmatpush1.msra.mxu0 0.0
        %571 = vmatprep.subr.mxu0 0.0
        %572 = vmatpush1.msra.mxu0 0.0
        %573 = vmatprep.subr.mxu0 0.0
        %574 = vmatpush1.msra.mxu0 0.0
        %575 = vmatprep.subr.mxu0 0.0
        %576 = vmatpush1.msra.mxu0 0.0
        %577 = vmatprep.subr.mxu0 0.0
        %578 = vmatpush1.msra.mxu0 0.0
        %579 = vmatprep.subr.mxu0 0.0
        %580 = vmatpush1.msra.mxu0 0.0
        %581 = vmatprep.subr.mxu0 0.0
        %582 = vmatpush1.msra.mxu0 0.0
        %583 = vmatprep.subr.mxu0 0.0
        %584 = vmatpush1.msra.mxu0 0.0
        %585 = vmatprep.subr.mxu0 0.0
        %586 = vmatpush1.msra.mxu0 0.0
        %587 = vmatprep.subr.mxu0 0.0
        %588 = vmatpush1.msra.mxu0 0.0
        %589 = vmatprep.subr.mxu0 0.0
        %590 = vmatpush1.msra.mxu0 0.0
        %591 = vmatprep.subr.mxu0 0.0
        %592 = vmatpush1.msra.mxu0 0.0
        %593 = vmatprep.subr.mxu0 0.0
        %594 = vmatpush1.msra.mxu0 0.0
        %595 = vmatprep.subr.mxu0 0.0
        %596 = vmatpush1.msra.mxu0 0.0
        %597 = vmatprep.subr.mxu0 0.0
        %598 = vmatpush1.msra.mxu0 0.0
        %599 = vmatprep.subr.mxu0 0.0
        %600 = vmatpush1.msra.mxu0 0.0
        %601 = vmatprep.subr.mxu0 0.0
        %602 = vmatpush1.msra.mxu0 0.0
        %603 = vmatprep.subr.mxu0 0.0
        %604 = vmatpush1.msra.mxu0 0.0
        %605 = vmatprep.mubr.f32.mxu0 0.0
        %606 = vmatmul.mubr.f32.gmra.mrb[0].mxu0 %v539
        %v607 = vpop.f32.mrb[0].mxu0
        %v608 = vadd.f32 0.0, %v607
        %v609 = vpop.f32.mrb[0].mxu0
        %610 = vdwg.mxu0
        %v612 = vsel %vm478, %v508, 0
        %614 = vmatprep.subr.mxu0 0.0
        %615 = vmatpush1.msra.mxu0 %v322
        %616 = vmatprep.subr.mxu0 0.0
        %617 = vmatpush1.msra.mxu0 0.0
        %618 = vmatprep.subr.mxu0 0.0
        %619 = vmatpush1.msra.mxu0 0.0
        %620 = vmatprep.subr.mxu0 0.0
        %621 = vmatpush1.msra.mxu0 0.0
        %622 = vmatprep.subr.mxu0 0.0
        %623 = vmatpush1.msra.mxu0 0.0
        %624 = vmatprep.subr.mxu0 0.0
        %625 = vmatpush1.msra.mxu0 0.0
        %626 = vmatprep.subr.mxu0 0.0
        %627 = vmatpush1.msra.mxu0 0.0
        %628 = vmatprep.subr.mxu0 0.0
        %629 = vmatpush1.msra.mxu0 0.0
        %630 = vmatprep.subr.mxu0 0.0
        %631 = vmatpush1.msra.mxu0 0.0
        %632 = vmatprep.subr.mxu0 0.0
        %633 = vmatpush1.msra.mxu0 0.0
        %634 = vmatprep.subr.mxu0 0.0
        %635 = vmatpush1.msra.mxu0 0.0
        %636 = vmatprep.subr.mxu0 0.0
        %637 = vmatpush1.msra.mxu0 0.0
        %638 = vmatprep.subr.mxu0 0.0
        %639 = vmatpush1.msra.mxu0 0.0
        %640 = vmatprep.subr.mxu0 0.0
        %641 = vmatpush1.msra.mxu0 0.0
        %642 = vmatprep.subr.mxu0 0.0
        %643 = vmatpush1.msra.mxu0 0.0
        %644 = vmatprep.subr.mxu0 0.0
        %645 = vmatpush1.msra.mxu0 0.0
        %646 = vmatprep.subr.mxu0 0.0
        %647 = vmatpush1.msra.mxu0 0.0
        %648 = vmatprep.subr.mxu0 0.0
        %649 = vmatpush1.msra.mxu0 0.0
        %650 = vmatprep.subr.mxu0 0.0
        %651 = vmatpush1.msra.mxu0 0.0
        %652 = vmatprep.subr.mxu0 0.0
        %653 = vmatpush1.msra.mxu0 0.0
        %654 = vmatprep.subr.mxu0 0.0
        %655 = vmatpush1.msra.mxu0 0.0
        %656 = vmatprep.subr.mxu0 0.0
        %657 = vmatpush1.msra.mxu0 0.0
        %658 = vmatprep.subr.mxu0 0.0
        %659 = vmatpush1.msra.mxu0 0.0
        %660 = vmatprep.subr.mxu0 0.0
        %661 = vmatpush1.msra.mxu0 0.0
        %662 = vmatprep.subr.mxu0 0.0
        %663 = vmatpush1.msra.mxu0 0.0
        %664 = vmatprep.subr.mxu0 0.0
        %665 = vmatpush1.msra.mxu0 0.0
        %666 = vmatprep.subr.mxu0 0.0
        %667 = vmatpush1.msra.mxu0 0.0
        %668 = vmatprep.subr.mxu0 0.0
        %669 = vmatpush1.msra.mxu0 0.0
        %670 = vmatprep.subr.mxu0 0.0
        %671 = vmatpush1.msra.mxu0 0.0
        %672 = vmatprep.subr.mxu0 0.0
        %673 = vmatpush1.msra.mxu0 0.0
        %674 = vmatprep.subr.mxu0 0.0
        %675 = vmatpush1.msra.mxu0 0.0
        %676 = vmatprep.subr.mxu0 0.0
        %677 = vmatpush1.msra.mxu0 0.0
        %678 = vmatprep.mubr.f32.mxu0 0.0
        %679 = vmatmul.mubr.f32.gmra.mrb[0].mxu0 %v612
        %v680 = vpop.f32.mrb[0].mxu0
        %v681 = vadd.f32 0.0, %v680
        %v682 = vpop.f32.mrb[0].mxu0
        %683 = vdwg.mxu0
        %v684 = vadd.f32 %v536, %v608
        %v685 = vadd.f32 %v537, %v681
        %686 = vst.msk [vmem:[#allocation5] sm:$0xff] %vm323, %v684
        %687 = vst.msk [vmem:[#allocation5 + $0x8] sm:$0xff] %vm323, %v685
        %688 = vst.msk [vmem:[#allocation3] sm:$0xff] %vm521, %v485
        %689 = vst.msk [vmem:[#allocation3 + $0x8] sm:$0xff] %vm521, %v486
        // Predicated region
        $region49: #{tpu_custom_call.1} parent=31 // pred_check
          %p690 = pneg %p299
        $region50: #{tpu_custom_call.1} parent=31 // pred_check_branch
          %692 = sbr.rel (%p690) target = $region52
        $region51: #{tpu_custom_call.1} parent=31 // pred_region
          %v693 = vld [vmem:[#allocation4] sm:$0xff]
          %v694 = vld [vmem:[#allocation4 + $0x8] sm:$0xff]
          %v695 = vrcp.pop %v693
          %v696 = vrcp.pop %v694
          %v697 = vld [vmem:[#allocation5] sm:$0xff]
          %v698 = vld [vmem:[#allocation5 + $0x8] sm:$0xff]
          %700 = vset.pattern.permute.xlu0 0
          %701 = vperm.xlu0 %700, %v695
          %v702 = vpop.permute.xlu0 %701
          %705 = vset.pattern.permute.xlu0 0
          %706 = vperm.xlu0 %705, %v696
          %v707 = vpop.permute.xlu0 %706
          %v709 = vmul.f32 %v697, %v702
          %v710 = vmul.f32 %v698, %v707
          %712 = vrot.lane.b32.xlu0 %v710, 32
          %v713 = vpop.permute.xlu0 %712
          %v715 = vsel %vm323, %v709, %v713
          %vm716 = vcmask 523264
          %717 = vst.msk [vmem:[%s295] sm:$0xff] %vm716, %v715
        $region52: #{tpu_custom_call.1} parent=31 // pred_fallthru
          _
        %s718 = sand.u32 %s136, 1
        %s719 = scalar_lea.sflag [#allocation8], %s718
        %s720 = sand.u32 %s136, 1
        %s721 = smul.addr %s720, 8
        %s722 = scalar_lea.vmem [#allocation12], %s721
        // Predicated region
        $region53: #{tpu_custom_call.1} parent=31 // pred_check
          %p723 = pneg %p146
        $region54: #{tpu_custom_call.1} parent=31 // pred_check_branch
          %725 = sbr.rel (%p723) target = $region56
        $region55: #{tpu_custom_call.1} parent=31 // pred_region
          %s727 = ssub.s32 128, 128
          %728 = vsyncadd %s719, %s727
          %s729 = sadd.s32 %s29, %s28
          %s730 = smul.addr %s729, 128
          %s731 = scalar_lea.hbm %s3, %s730
          %s733 = sshll.u32 %s722, 4
          %s734 = int_to_ptr.vmem [resolvable:$true] %s733
          %736 = dma.vmem_to_hbm [thread:$0]  %s734, 128, %s731, %s719
        $region56: #{tpu_custom_call.1} parent=31 // pred_fallthru
          _
      $region32: #{tpu_custom_call.1} parent=5 // pred_fallthru
        _
      %p737 = scmp.le.s32.totalorder 2, %s18
      // Predicated region
      $region57: #{tpu_custom_call.1} parent=5 // pred_check
        %p738 = pneg %p737
      $region58: #{tpu_custom_call.1} parent=5 // pred_check_branch
        %740 = sbr.rel (%p738) target = $region60
      $region59: #{tpu_custom_call.1} parent=5 // pred_region
        %s741 = ssub.s32 %s18, 2
        // Predicated region
        $region61: #{tpu_custom_call.1} parent=59 // pred_check
          %p742 = pneg %p152
        $region62: #{tpu_custom_call.1} parent=59 // pred_check_branch
          %744 = sbr.rel (%p742) target = $region64
        $region63: #{tpu_custom_call.1} parent=59 // pred_region
          %s745 = sand.u32 %s137, 1
          %s746 = scalar_lea.sflag [#allocation8], %s745
          %s747 = sand.u32 %s137, 1
          %s748 = smul.addr %s747, 8
          %s749 = scalar_lea.vmem [#allocation12], %s748
          %750 = dma.done %s746, 128
        $region64: #{tpu_custom_call.1} parent=59 // pred_fallthru
          _
      $region60: #{tpu_custom_call.1} parent=5 // pred_fallthru
        _
    $region6: #{tpu_custom_call.1} parent=1 // loop_footer
      %s22 = sadd.s32 1, %s18
    $region7: #{tpu_custom_call.1} parent=1 // loop_footer_branch
      %17 = sbr.rel target = $region3
    $region8: #{tpu_custom_call.1} parent=1 // loop_exit
      _
    %751 = vsyncpa [#allocation7], 1
    %s752 = scalar_lea.sflag [#allocation7], 1
    %753 = vsyncpa %s752, 1
    %754 = vsyncpa [#allocation10], 1
    %s755 = scalar_lea.sflag [#allocation10], 1
    %756 = vsyncpa %s755, 1
    %757 = vsyncpa [#allocation8], 1
    %s758 = scalar_lea.sflag [#allocation8], 1
    %759 = vsyncpa %s758, 1

</llo_original>
